<compile_context>
chip_gen: v6e
topology: v6e:2x2x1
jax: 0.10.0
libtpu: 0.0.40
codegen_flags: <defaults>
</compile_context>

<pallas_src>
import functools

import jax
import jax.numpy as jnp
from jax.experimental import pallas as pl
from jax.experimental.pallas import tpu as pltpu


def _label_smoothing_kernel(pred_ref, target_ref, out_ref, *, smoothing, n_total):
    # One row tile per grid step.  All math in f32 regardless of the input dtype.
    p = pred_ref[...].astype(jnp.float32)                     # (TN, C)
    tn, c = p.shape

    # --- log-sum-exp per row (exp/log live on the EUP slot; computed once, reused twice) ---
    m = jnp.max(p, axis=-1, keepdims=True)                    # (TN, 1)
    lse = m + jnp.log(jnp.sum(jnp.exp(p - m), axis=-1, keepdims=True))  # (TN, 1)

    # --- gather p at the target class via a single masked reduction (no full true_dist) ---
    col = jax.lax.broadcasted_iota(jnp.int32, (tn, c), 1)     # class index per lane
    tgt = target_ref[...]                                     # (TN, 1) int32
    p_tgt = jnp.sum(jnp.where(col == tgt, p, 0.0), axis=-1, keepdims=True)  # (TN, 1)
    sum_p = jnp.sum(p, axis=-1, keepdims=True)                # (TN, 1)

    on = jnp.float32(1.0 - smoothing)
    off = jnp.float32(smoothing / max(c - 1, 1))              # guard C == 1
    per_row = (on - off) * (lse - p_tgt) + off * (jnp.float32(c) * lse - sum_p)  # (TN, 1)

    # --- mask rows beyond the true N (partial last tile); they contribute exactly 0 ---
    row0 = pl.program_id(0) * tn
    rows = row0 + jax.lax.broadcasted_iota(jnp.int32, (tn, 1), 0)
    out_ref[...] = jnp.where(rows < n_total, per_row, 0.0)


def label_smoothing_loss(pred, target, smoothing=0.0, *, block_rows=None):
    """pred: (N, C) float32/bfloat16, target: (N,) int. Returns scalar float32 loss."""
    n, c = pred.shape
    target2d = target.astype(jnp.int32).reshape(n, 1)

    # Pick the row-tile size: largest multiple of 8 keeping one block <= ~8 MiB, so the
    # double-buffered pipeline stays inside the default scoped-VMEM budget on every TPU
    # generation (including v7x's 64 MiB VMEM).  Callers can override for tuning.
    if block_rows is None:
        bytes_per_row = max(int(c) * jnp.dtype(pred.dtype).itemsize, 1)
        budget = 8 * 1024 * 1024
        block_rows = max(8, min(1024, (budget // bytes_per_row) // 8 * 8))
    block_rows = int(min(block_rows, max(8, ((n + 7) // 8) * 8)))

    num_tiles = pl.cdiv(n, block_rows)
    out_rows = num_tiles * block_rows

    per_row = pl.pallas_call(
        functools.partial(
            _label_smoothing_kernel, smoothing=float(smoothing), n_total=int(n)
        ),
        out_shape=jax.ShapeDtypeStruct((out_rows, 1), jnp.float32),
        grid=(num_tiles,),
        in_specs=[
            pl.BlockSpec((block_rows, c), lambda i: (i, 0)),   # pred row tile (native dtype)
            pl.BlockSpec((block_rows, 1), lambda i: (i, 0)),   # target indices for the tile
        ],
        out_specs=pl.BlockSpec((block_rows, 1), lambda i: (i, 0)),
        compiler_params=pltpu.CompilerParams(
            dimension_semantics=("parallel",),                  # megacore sharding on v7x
        ),
    )(pred, target2d)

    # Tiny final reduction in the wrapper; padded rows are already zero.  Divide by global N.
    return jnp.sum(per_row) / jnp.float32(n)


def _reference(pred, target, smoothing):
    logp = jax.nn.log_softmax(pred.astype(jnp.float32), axis=-1)
    n, c = pred.shape
    true_dist = jnp.full((n, c), smoothing / (c - 1), dtype=jnp.float32)
    true_dist = true_dist.at[jnp.arange(n), target].set(1.0 - smoothing)
    return jnp.mean(jnp.sum(-true_dist * logp, axis=-1))


if __name__ == "__main__":
    key = jax.random.PRNGKey(0)
    k1, k2, k3, k4 = jax.random.split(key, 4)
    smoothing = 0.1

    # Case 1: f32, N a multiple of the row tile.
    N, C = 8, 32
    pred = jax.random.normal(k1, (N, C), dtype=jnp.float32)
    target = jax.random.randint(k2, (N,), 0, C, dtype=jnp.int32)
    loss = jax.block_until_ready(label_smoothing_loss(pred, target, smoothing))
    ref = _reference(pred, target, smoothing)
    assert jnp.allclose(loss, ref, atol=1e-5, rtol=1e-5), (loss, ref)

    # Case 2: ragged N (N % block_rows != 0) exercises the remainder-row masking + multi-tile grid.
    N2, C2 = 20, 32
    pred2 = jax.random.normal(k3, (N2, C2), dtype=jnp.float32)
    target2 = jax.random.randint(k4, (N2,), 0, C2, dtype=jnp.int32)
    loss2 = jax.block_until_ready(
        label_smoothing_loss(pred2, target2, smoothing, block_rows=8)
    )
    ref2 = _reference(pred2, target2, smoothing)
    assert jnp.allclose(loss2, ref2, atol=1e-5, rtol=1e-5), (loss2, ref2)

    # Case 3: bf16 input fed straight to the kernel (no wrapper up-cast; f32 math inside).
    pred_bf16 = pred.astype(jnp.bfloat16)
    loss3 = jax.block_until_ready(label_smoothing_loss(pred_bf16, target, smoothing))
    ref3 = _reference(pred_bf16.astype(jnp.float32), target, smoothing)
    assert jnp.allclose(loss3, ref3, atol=1e-2, rtol=1e-2), (loss3, ref3)

    print("KERNEL_OK")
</pallas_src>

<mosaic_0001>
module attributes {stable_mosaic.version = 11 : i64} {
  func.func @_label_smoothing_kernel(%arg0: i32, %arg1: memref<8x32xf32, #tpu.memory_space<vmem>>, %arg2: memref<8x1xi32, #tpu.memory_space<vmem>>, %arg3: memref<8x1xf32, #tpu.memory_space<vmem>>) attributes {dimension_semantics = [#tpu.dimension_semantics<parallel>], iteration_bounds = array<i64: 1>, scalar_prefetch = 0 : i64, scratch_operands = 0 : i64, tpu.core_type = #tpu.core_type<tc>, window_params = [{transform_indices = @transform_0, window_bounds = array<i64: 8, 32>}, {transform_indices = @transform_1, window_bounds = array<i64: 8, 1>}, {transform_indices = @transform_2, window_bounds = array<i64: 8, 1>}]} {
    %c0 = arith.constant 0 : index
    %c0_0 = arith.constant 0 : index
    %0 = vector.load %arg1[%c0, %c0_0] : memref<8x32xf32, #tpu.memory_space<vmem>>, vector<8x32xf32>
    %cst = arith.constant dense<0xFF800000> : vector<8xf32>
    %1 = vector.multi_reduction <maximumf>, %0, %cst [1] : vector<8x32xf32> to vector<8xf32>
    %2 = vector.shape_cast %1 : vector<8xf32> to vector<8x1xf32>
    %3 = vector.broadcast %2 : vector<8x1xf32> to vector<8x32xf32>
    %4 = arith.subf %0, %3 : vector<8x32xf32>
    %5 = math.exp %4 : vector<8x32xf32>
    %cst_1 = arith.constant dense<0.000000e+00> : vector<8xf32>
    %6 = vector.multi_reduction <add>, %5, %cst_1 [1] : vector<8x32xf32> to vector<8xf32>
    %7 = vector.shape_cast %6 : vector<8xf32> to vector<8x1xf32>
    %8 = math.log %7 : vector<8x1xf32>
    %9 = arith.addf %2, %8 : vector<8x1xf32>
    %10 = tpu.iota {dimensions = array<i32: 1>} : vector<8x32xi32>
    %c0_2 = arith.constant 0 : index
    %c0_3 = arith.constant 0 : index
    %11 = vector.load %arg2[%c0_2, %c0_3] : memref<8x1xi32, #tpu.memory_space<vmem>>, vector<8x1xi32>
    %12 = vector.broadcast %11 : vector<8x1xi32> to vector<8x32xi32>
    %13 = arith.cmpi eq, %10, %12 : vector<8x32xi32>
    %cst_4 = arith.constant 0.000000e+00 : f32
    %14 = vector.broadcast %cst_4 : f32 to vector<8x32xf32>
    %15 = arith.select %13, %0, %14 : vector<8x32xi1>, vector<8x32xf32>
    %cst_5 = arith.constant dense<0.000000e+00> : vector<8xf32>
    %16 = vector.multi_reduction <add>, %15, %cst_5 [1] : vector<8x32xf32> to vector<8xf32>
    %17 = vector.shape_cast %16 : vector<8xf32> to vector<8x1xf32>
    %cst_6 = arith.constant dense<0.000000e+00> : vector<8xf32>
    %18 = vector.multi_reduction <add>, %0, %cst_6 [1] : vector<8x32xf32> to vector<8xf32>
    %19 = vector.shape_cast %18 : vector<8xf32> to vector<8x1xf32>
    %cst_7 = arith.constant 0.899999976 : f32
    %cst_8 = arith.constant 0.0032258064 : f32
    %20 = arith.subf %cst_7, %cst_8 : f32
    %21 = arith.subf %9, %17 : vector<8x1xf32>
    %22 = vector.broadcast %20 : f32 to vector<8x1xf32>
    %23 = arith.mulf %22, %21 : vector<8x1xf32>
    %cst_9 = arith.constant 3.200000e+01 : f32
    %24 = vector.broadcast %cst_9 : f32 to vector<8x1xf32>
    %25 = arith.mulf %24, %9 : vector<8x1xf32>
    %26 = arith.subf %25, %19 : vector<8x1xf32>
    %cst_10 = arith.constant 0.0032258064 : f32
    %27 = vector.broadcast %cst_10 : f32 to vector<8x1xf32>
    %28 = arith.mulf %27, %26 : vector<8x1xf32>
    %29 = arith.addf %23, %28 : vector<8x1xf32>
    %c8_i32 = arith.constant 8 : i32
    %30 = arith.muli %arg0, %c8_i32 : i32
    %31 = tpu.iota {dimensions = array<i32: 0>} : vector<8x1xi32>
    %32 = vector.broadcast %30 : i32 to vector<8x1xi32>
    %33 = arith.addi %32, %31 : vector<8x1xi32>
    %c8_i32_11 = arith.constant 8 : i32
    %34 = vector.broadcast %c8_i32_11 : i32 to vector<8x1xi32>
    %35 = arith.cmpi slt, %33, %34 : vector<8x1xi32>
    %cst_12 = arith.constant 0.000000e+00 : f32
    %36 = vector.broadcast %cst_12 : f32 to vector<8x1xf32>
    %37 = arith.select %35, %29, %36 : vector<8x1xi1>, vector<8x1xf32>
    %c0_13 = arith.constant 0 : index
    %c0_14 = arith.constant 0 : index
    %38 = vector.load %arg3[%c0_13, %c0_14] : memref<8x1xf32, #tpu.memory_space<vmem>>, vector<8x1xf32>
    tpu.vector_store %arg3[%c0_13, %c0_14], %37 {strides = array<i32>} : memref<8x1xf32, #tpu.memory_space<vmem>>, vector<8x1xf32>,
    return
  }
  func.func @transform_0(%arg0: i32) -> (i32, i32) {
    %c0_i32 = arith.constant 0 : i32
    %c0_i32_0 = arith.constant 0 : i32
    return %arg0, %c0_i32 : i32, i32
  }
  func.func @transform_1(%arg0: i32) -> (i32, i32) {
    %c0_i32 = arith.constant 0 : i32
    %c0_i32_0 = arith.constant 0 : i32
    return %arg0, %c0_i32 : i32, i32
  }
  func.func @transform_2(%arg0: i32) -> (i32, i32) {
    %c0_i32 = arith.constant 0 : i32
    %c0_i32_0 = arith.constant 0 : i32
    return %arg0, %c0_i32 : i32, i32
  }
}

</mosaic_0001>

<llo_original>
// kernel: tpu_custom_call.1
$region0: #{tpu_custom_call.1}
  #allocation0 [shape = 'u32[]', space=smem, size = 0x4, offset = 0x4, fixed_abs, tag = 'smem constant byte address 0x4 - core index']
  #allocation1 [shape = 'u32[144,128]{1,0:T(1,128)}', space=vmem, size = 0x12000, scoped, tag = 'internal scratch']
  %s0 = inlined_call_operand.vmem [shape: f32[8,32], index: 0, kind: input, shape index: {}]
  %s1 = inlined_call_operand.vmem [shape: s32[8,1], index: 1, kind: input, shape index: {}]
  %s2 = inlined_call_operand.vmem [shape: f32[8,1], index: 2, kind: output, shape index: {}]
  %s3 = sld [smem:[#allocation0]]
  $region18: #{tpu_custom_call.1} parent=0
    _
  %s5 = ssub.s32 1, %s3
  %s6 = scalar_select 0, %s5, %s3
  // Predicated region
  $region2: #{tpu_custom_call.1} parent=0 // pred_check
    _
  $region3: #{tpu_custom_call.1} parent=0 // pred_check_branch
    %8 = sbr.rel (0) target = $region5
  $region4: #{tpu_custom_call.1} parent=0 // pred_region
    _
  $region5: #{tpu_custom_call.1} parent=0 // pred_fallthru
    _
  // Predicated region
  $region6: #{tpu_custom_call.1} parent=0 // pred_check
    _
  $region7: #{tpu_custom_call.1} parent=0 // pred_check_branch
    %10 = sbr.rel (0) target = $region9
  $region8: #{tpu_custom_call.1} parent=0 // pred_region
    _
  $region9: #{tpu_custom_call.1} parent=0 // pred_fallthru
    _
  %v11 = vld [vmem:[%s0] sm:$0xff]
  %vm12 = vcmask 261120
  %v13 = vsel %vm12, %v11, -inf
  %14 = vmax.xlane.f32.xlu0 %v13
  %v15 = vpop.xlane.xlu0 %14
  %v16 = vsub.f32 %v11, %v15
  %v17 = vmul.f32 %v16, 1.442695
  %v18 = vpow.pop %v17
  %v19 = vsel %vm12, %v18, 0.0
  %20 = vadd.xlane.f32.xlu0 %v19
  %v21 = vpop.xlane.xlu0 %20
  %v22 = vlog2.pop %v21
  %v23 = vmul.f32 %v22, 0.6931472
  %v24 = vadd.f32 %v15, %v23
  %v25 = vlaneseq
  %v26 = vand.u32 %v25, 127
  %v27 = vld [vmem:[%s1] sm:$0xff]
  %28 = vset.pattern.permute.xlu0 0
  %29 = vperm.xlu0 %28, %v27
  %v30 = vpop.permute.xlu0 %29
  %vm31 = vcmp.eq.s32.totalorder %v26, %v30
  %v32 = vsel %vm31, %v11, 0.0
  %v33 = vsel %vm12, %v32, 0.0
  %34 = vadd.xlane.f32.xlu0 %v33
  %v35 = vpop.xlane.xlu0 %34
  %v36 = vsel %vm12, %v11, 0.0
  %37 = vadd.xlane.f32.xlu0 %v36
  %v38 = vpop.xlane.xlu0 %37
  %v39 = vsub.f32 %v24, %v35
  %v40 = vmul.f32 %v39, 0.8967742
  %v41 = vmul.f32 %v24, 32.0
  %v42 = vsub.f32 %v41, %v38
  %v43 = vmul.f32 %v42, 0.0032258064
  %v44 = vadd.f32 %v40, %v43
  %s45 = smul.u32 0, 8
  %v46 = vlaneseq
  %v47 = vshrl.u32 %v46, 7
  %v48 = vstv %s45
  %v49 = vadd.s32 %v48, %v47
  %vm50 = vcmp.lt.s32.totalorder %v49, 8
  %v51 = vsel %vm50, %v44, 0.0
  %vm52 = vcmask 7168
  %53 = vst.msk [vmem:[%s2] sm:$0xff] %vm52, %v51
  // Predicated region
  $region10: #{tpu_custom_call.1} parent=0 // pred_check
    _
  $region11: #{tpu_custom_call.1} parent=0 // pred_check_branch
    %55 = sbr.rel (0) target = $region13
  $region12: #{tpu_custom_call.1} parent=0 // pred_region
    _
  $region13: #{tpu_custom_call.1} parent=0 // pred_fallthru
    _
  // Predicated region
  $region14: #{tpu_custom_call.1} parent=0 // pred_check
    _
  $region15: #{tpu_custom_call.1} parent=0 // pred_check_branch
    %57 = sbr.rel (0) target = $region17
  $region16: #{tpu_custom_call.1} parent=0 // pred_region
    _
  $region17: #{tpu_custom_call.1} parent=0 // pred_fallthru
    _

</llo_original>
